<compile_context>
chip_gen: v5e
topology: v5e:2x2
jax: 0.10.0
libtpu: 0.0.40
codegen_flags: <defaults>
</compile_context>

<pallas_src>
import jax
import jax.numpy as jnp
from jax.experimental import pallas as pl
from jax.experimental.pallas import tpu as pltpu


def head_kernel(x_ref, w_ref, b_ref, o_ref):
    # fused Branch (eval): single affine map  (B, 768) @ (768, C) + (1, C)
    logits = jnp.dot(x_ref[...], w_ref[...],
                     preferred_element_type=jnp.float32) + b_ref[...]
    # sigmoid: exp lands on the EUP slot; the rest is trivial VPU work.
    o_ref[...] = 1.0 / (1.0 + jnp.exp(-logits))


def fold_branch_params(p, eps=1e-5):
    """One-time offline folding of the eval-mode Branch into W (F,C), b (1,C)."""
    scale = p["gamma"] * jax.lax.rsqrt(p["running_var"] + eps)      # (1, H)
    w1_eff = p["w1"] * scale                                        # (F, H)
    b1_eff = (p["b1"] - p["running_mean"]) * scale + p["beta"]      # (1, H)
    return {
        "w": (w1_eff @ p["w2"]).astype(jnp.float32),                # (F, C)
        "b": (b1_eff @ p["w2"] + p["b2"]).astype(jnp.float32),      # (1, C)
    }


def base_model_head(pooler_out, folded):
    """pooler_out: (B, 768) f32 CLS features. Returns sigmoid(Branch(pooler_out))."""
    B, F = pooler_out.shape
    C = folded["w"].shape[1]
    itemsize = 4
    cost = pl.CostEstimate(
        flops=2 * B * F * C + 2 * B * C,
        transcendentals=B * C,
        bytes_accessed=(B * F + F * C + C + B * C) * itemsize,
    )
    return pl.pallas_call(
        head_kernel,
        out_shape=jax.ShapeDtypeStruct((B, C), jnp.float32),
        # whole arrays resident in VMEM (gridless): x 24 KiB, W 12 KiB, b tiny.
        in_specs=[pl.BlockSpec(memory_space=pltpu.MemorySpace.VMEM)] * 3,
        out_specs=pl.BlockSpec(memory_space=pltpu.MemorySpace.VMEM),
        cost_estimate=cost,
    )(pooler_out, folded["w"], folded["b"])


def init_params(key, input_size=768, hidden_size=512, num_classes=4):
    """Deterministic synthetic parameters matching Branch(768, 512, p, C)."""
    k1, k2, k3, k4 = jax.random.split(key, 4)
    s1 = 1.0 / jnp.sqrt(jnp.float32(input_size))
    s2 = 1.0 / jnp.sqrt(jnp.float32(hidden_size))
    return {
        # stored already transposed vs. PyTorch: (in, out)
        "w1": jax.random.uniform(k1, (input_size, hidden_size),
                                 jnp.float32, -s1, s1),
        "b1": jax.random.uniform(k2, (1, hidden_size), jnp.float32, -s1, s1),
        "gamma": jnp.ones((1, hidden_size), jnp.float32),
        "beta": jnp.zeros((1, hidden_size), jnp.float32),
        "running_mean": jnp.zeros((1, hidden_size), jnp.float32),
        "running_var": jnp.ones((1, hidden_size), jnp.float32),
        "w2": jax.random.uniform(k3, (hidden_size, num_classes),
                                 jnp.float32, -s2, s2),
        "b2": jax.random.uniform(k4, (1, num_classes), jnp.float32, -s2, s2),
    }


if __name__ == "__main__":
    key = jax.random.PRNGKey(0)
    k_hid, k_par = jax.random.split(key)

    B, S, F, H, C = 8, 8, 768, 512, 4  # small seq stands in for BERT's 512
    # deterministic stand-in for original_model(...)'s last_hidden_state
    last_hidden_state = jax.random.normal(k_hid, (B, S, F), jnp.float32)
    params = init_params(k_par, input_size=F, hidden_size=H, num_classes=C)

    # one-time preprocessing (not per-call work)
    folded = fold_branch_params(params)

    # glue: pooler_out = last_hidden_state[:, 0, :]   (CLS token)
    pooler_out = last_hidden_state[:, 0, :]

    out = jax.block_until_ready(base_model_head(pooler_out, folded))

    # sanity: pure-JAX reference of the ORIGINAL (un-collapsed) eval-mode branch
    x = pooler_out
    h = x @ params["w1"] + params["b1"]
    hn = (h - params["running_mean"]) / jnp.sqrt(params["running_var"] + 1e-5)
    hn = hn * params["gamma"] + params["beta"]
    ref = jax.nn.sigmoid(hn @ params["w2"] + params["b2"])
    assert out.shape == (B, C)
    assert jnp.allclose(out, ref, atol=1e-4), "mismatch vs reference"

    print("KERNEL_OK")
</pallas_src>

<mosaic_0001>
module attributes {stable_mosaic.version = 11 : i64} {
  func.func @head_kernel(%arg0: memref<8x768xf32, #tpu.memory_space<vmem>>, %arg1: memref<768x4xf32, #tpu.memory_space<vmem>>, %arg2: memref<1x4xf32, #tpu.memory_space<vmem>>, %arg3: memref<8x4xf32, #tpu.memory_space<vmem>>) attributes {dimension_semantics = [], scalar_prefetch = 0 : i64, scratch_operands = 0 : i64, tpu.core_type = #tpu.core_type<tc>} {
    %c0 = arith.constant 0 : index
    %c0_0 = arith.constant 0 : index
    %0 = vector.load %arg0[%c0, %c0_0] : memref<8x768xf32, #tpu.memory_space<vmem>>, vector<8x768xf32>
    %c0_1 = arith.constant 0 : index
    %c0_2 = arith.constant 0 : index
    %1 = vector.load %arg1[%c0_1, %c0_2] : memref<768x4xf32, #tpu.memory_space<vmem>>, vector<768x4xf32>
    %cst = arith.constant dense<0.000000e+00> : vector<8x4xf32>
    %2 = tpu.matmul %0, %1, %cst {dimension_numbers = #tpu.dot_dimension_numbers<[1], [0], [0], [1], [0, 0, 1, 1], [], []>} : vector<8x768xf32>, vector<768x4xf32>, vector<8x4xf32> -> vector<8x4xf32>
    %c0_3 = arith.constant 0 : index
    %c0_4 = arith.constant 0 : index
    %3 = vector.load %arg2[%c0_3, %c0_4] : memref<1x4xf32, #tpu.memory_space<vmem>>, vector<1x4xf32>
    %4 = vector.broadcast %3 : vector<1x4xf32> to vector<8x4xf32>
    %5 = arith.addf %2, %4 : vector<8x4xf32>
    %cst_5 = arith.constant 0.000000e+00 : f32
    %6 = vector.broadcast %cst_5 : f32 to vector<8x4xf32>
    %7 = arith.subf %6, %5 : vector<8x4xf32>
    %8 = math.exp %7 : vector<8x4xf32>
    %cst_6 = arith.constant 1.000000e+00 : f32
    %9 = vector.broadcast %cst_6 : f32 to vector<8x4xf32>
    %10 = arith.addf %9, %8 : vector<8x4xf32>
    %cst_7 = arith.constant 1.000000e+00 : f32
    %11 = vector.broadcast %cst_7 : f32 to vector<8x4xf32>
    %12 = arith.divf %11, %10 : vector<8x4xf32>
    %c0_8 = arith.constant 0 : index
    %c0_9 = arith.constant 0 : index
    %13 = vector.load %arg3[%c0_8, %c0_9] : memref<8x4xf32, #tpu.memory_space<vmem>>, vector<8x4xf32>
    tpu.vector_store %arg3[%c0_8, %c0_9], %12 {strides = array<i32>} : memref<8x4xf32, #tpu.memory_space<vmem>>, vector<8x4xf32>,
    return
  }
}

</mosaic_0001>

<llo_original>
// kernel: tpu_custom_call.1
$region0: #{tpu_custom_call.1}
  #allocation0 [shape = 'u32[]', space=smem, size = 0x4, offset = 0x4, fixed_abs, tag = 'smem constant byte address 0x4 - core index']
  #allocation1 [shape = 'u32[72,128]{1,0:T(1,128)}', space=vmem, size = 0x9000, scoped, tag = 'internal scratch']
  %s0 = inlined_call_operand.vmem [shape: f32[8,768], index: 0, kind: input, shape index: {}]
  %s1 = inlined_call_operand.vmem [shape: f32[768,4], index: 1, kind: input, shape index: {}]
  %s2 = inlined_call_operand.vmem [shape: f32[1,4], index: 2, kind: input, shape index: {}]
  %s3 = inlined_call_operand.vmem [shape: f32[8,4], index: 3, kind: output, shape index: {}]
  %s4 = sld [smem:[#allocation0]]
  $region22: #{tpu_custom_call.1} parent=0
    _
  %s6 = ssub.s32 1, %s4
  %s7 = scalar_select 0, %s6, %s4
  // Predicated region
  $region2: #{tpu_custom_call.1} parent=0 // pred_check
    _
  $region3: #{tpu_custom_call.1} parent=0 // pred_check_branch
    %9 = sbr.rel (0) target = $region5
  $region4: #{tpu_custom_call.1} parent=0 // pred_region
    _
  $region5: #{tpu_custom_call.1} parent=0 // pred_fallthru
    _
  // Predicated region
  $region6: #{tpu_custom_call.1} parent=0 // pred_check
    _
  $region7: #{tpu_custom_call.1} parent=0 // pred_check_branch
    %11 = sbr.rel (0) target = $region9
  $region8: #{tpu_custom_call.1} parent=0 // pred_region
    _
  $region9: #{tpu_custom_call.1} parent=0 // pred_fallthru
    _
  // Predicated region
  $region10: #{tpu_custom_call.1} parent=0 // pred_check
    _
  $region11: #{tpu_custom_call.1} parent=0 // pred_check_branch
    %13 = sbr.rel (0) target = $region13
  $region12: #{tpu_custom_call.1} parent=0 // pred_region
    _
  $region13: #{tpu_custom_call.1} parent=0 // pred_fallthru
    _
  %v14 = vld [vmem:[%s0] sm:$0xff]
  %v15 = vld [vmem:[%s0 + $0x8] sm:$0xff]
  %v16 = vld [vmem:[%s0 + $0x10] sm:$0xff]
  %v17 = vld [vmem:[%s0 + $0x18] sm:$0xff]
  %v18 = vld [vmem:[%s0 + $0x20] sm:$0xff]
  %v19 = vld [vmem:[%s0 + $0x28] sm:$0xff]
  %v20 = vld [vmem:[%s1] sm:$0xff]
  %v21 = vld [vmem:[%s1 + $0x8] sm:$0xff]
  %v22 = vld [vmem:[%s1 + $0x10] sm:$0xff]
  %v23 = vld [vmem:[%s1 + $0x18] sm:$0xff]
  %v24 = vld [vmem:[%s1 + $0x20] sm:$0xff]
  %v25 = vld [vmem:[%s1 + $0x28] sm:$0xff]
  %v26 = vld [vmem:[%s1 + $0x30] sm:$0xff]
  %v27 = vld [vmem:[%s1 + $0x38] sm:$0xff]
  %v28 = vld [vmem:[%s1 + $0x40] sm:$0xff]
  %v29 = vld [vmem:[%s1 + $0x48] sm:$0xff]
  %v30 = vld [vmem:[%s1 + $0x50] sm:$0xff]
  %v31 = vld [vmem:[%s1 + $0x58] sm:$0xff]
  %v32 = vld [vmem:[%s1 + $0x60] sm:$0xff]
  %v33 = vld [vmem:[%s1 + $0x68] sm:$0xff]
  %v34 = vld [vmem:[%s1 + $0x70] sm:$0xff]
  %v35 = vld [vmem:[%s1 + $0x78] sm:$0xff]
  %v36 = vld [vmem:[%s1 + $0x80] sm:$0xff]
  %v37 = vld [vmem:[%s1 + $0x88] sm:$0xff]
  %v38 = vld [vmem:[%s1 + $0x90] sm:$0xff]
  %v39 = vld [vmem:[%s1 + $0x98] sm:$0xff]
  %v40 = vld [vmem:[%s1 + $0xa0] sm:$0xff]
  %v41 = vld [vmem:[%s1 + $0xa8] sm:$0xff]
  %v42 = vld [vmem:[%s1 + $0xb0] sm:$0xff]
  %v43 = vld [vmem:[%s1 + $0xb8] sm:$0xff]
  %v44 = vld [vmem:[%s1 + $0xc0] sm:$0xff]
  %v45 = vld [vmem:[%s1 + $0xc8] sm:$0xff]
  %v46 = vld [vmem:[%s1 + $0xd0] sm:$0xff]
  %v47 = vld [vmem:[%s1 + $0xd8] sm:$0xff]
  %v48 = vld [vmem:[%s1 + $0xe0] sm:$0xff]
  %v49 = vld [vmem:[%s1 + $0xe8] sm:$0xff]
  %v50 = vld [vmem:[%s1 + $0xf0] sm:$0xff]
  %v51 = vld [vmem:[%s1 + $0xf8] sm:$0xff]
  %v52 = vld [vmem:[%s1 + $0x100] sm:$0xff]
  %v53 = vld [vmem:[%s1 + $0x108] sm:$0xff]
  %v54 = vld [vmem:[%s1 + $0x110] sm:$0xff]
  %v55 = vld [vmem:[%s1 + $0x118] sm:$0xff]
  %v56 = vld [vmem:[%s1 + $0x120] sm:$0xff]
  %v57 = vld [vmem:[%s1 + $0x128] sm:$0xff]
  %v58 = vld [vmem:[%s1 + $0x130] sm:$0xff]
  %v59 = vld [vmem:[%s1 + $0x138] sm:$0xff]
  %v60 = vld [vmem:[%s1 + $0x140] sm:$0xff]
  %v61 = vld [vmem:[%s1 + $0x148] sm:$0xff]
  %v62 = vld [vmem:[%s1 + $0x150] sm:$0xff]
  %v63 = vld [vmem:[%s1 + $0x158] sm:$0xff]
  %v64 = vld [vmem:[%s1 + $0x160] sm:$0xff]
  %v65 = vld [vmem:[%s1 + $0x168] sm:$0xff]
  %v66 = vld [vmem:[%s1 + $0x170] sm:$0xff]
  %v67 = vld [vmem:[%s1 + $0x178] sm:$0xff]
  %v68 = vld [vmem:[%s1 + $0x180] sm:$0xff]
  %v69 = vld [vmem:[%s1 + $0x188] sm:$0xff]
  %v70 = vld [vmem:[%s1 + $0x190] sm:$0xff]
  %v71 = vld [vmem:[%s1 + $0x198] sm:$0xff]
  %v72 = vld [vmem:[%s1 + $0x1a0] sm:$0xff]
  %v73 = vld [vmem:[%s1 + $0x1a8] sm:$0xff]
  %v74 = vld [vmem:[%s1 + $0x1b0] sm:$0xff]
  %v75 = vld [vmem:[%s1 + $0x1b8] sm:$0xff]
  %v76 = vld [vmem:[%s1 + $0x1c0] sm:$0xff]
  %v77 = vld [vmem:[%s1 + $0x1c8] sm:$0xff]
  %v78 = vld [vmem:[%s1 + $0x1d0] sm:$0xff]
  %v79 = vld [vmem:[%s1 + $0x1d8] sm:$0xff]
  %v80 = vld [vmem:[%s1 + $0x1e0] sm:$0xff]
  %v81 = vld [vmem:[%s1 + $0x1e8] sm:$0xff]
  %v82 = vld [vmem:[%s1 + $0x1f0] sm:$0xff]
  %v83 = vld [vmem:[%s1 + $0x1f8] sm:$0xff]
  %v84 = vld [vmem:[%s1 + $0x200] sm:$0xff]
  %v85 = vld [vmem:[%s1 + $0x208] sm:$0xff]
  %v86 = vld [vmem:[%s1 + $0x210] sm:$0xff]
  %v87 = vld [vmem:[%s1 + $0x218] sm:$0xff]
  %v88 = vld [vmem:[%s1 + $0x220] sm:$0xff]
  %v89 = vld [vmem:[%s1 + $0x228] sm:$0xff]
  %v90 = vld [vmem:[%s1 + $0x230] sm:$0xff]
  %v91 = vld [vmem:[%s1 + $0x238] sm:$0xff]
  %v92 = vld [vmem:[%s1 + $0x240] sm:$0xff]
  %v93 = vld [vmem:[%s1 + $0x248] sm:$0xff]
  %v94 = vld [vmem:[%s1 + $0x250] sm:$0xff]
  %v95 = vld [vmem:[%s1 + $0x258] sm:$0xff]
  %v96 = vld [vmem:[%s1 + $0x260] sm:$0xff]
  %v97 = vld [vmem:[%s1 + $0x268] sm:$0xff]
  %v98 = vld [vmem:[%s1 + $0x270] sm:$0xff]
  %v99 = vld [vmem:[%s1 + $0x278] sm:$0xff]
  %v100 = vld [vmem:[%s1 + $0x280] sm:$0xff]
  %v101 = vld [vmem:[%s1 + $0x288] sm:$0xff]
  %v102 = vld [vmem:[%s1 + $0x290] sm:$0xff]
  %v103 = vld [vmem:[%s1 + $0x298] sm:$0xff]
  %v104 = vld [vmem:[%s1 + $0x2a0] sm:$0xff]
  %v105 = vld [vmem:[%s1 + $0x2a8] sm:$0xff]
  %v106 = vld [vmem:[%s1 + $0x2b0] sm:$0xff]
  %v107 = vld [vmem:[%s1 + $0x2b8] sm:$0xff]
  %v108 = vld [vmem:[%s1 + $0x2c0] sm:$0xff]
  %v109 = vld [vmem:[%s1 + $0x2c8] sm:$0xff]
  %v110 = vld [vmem:[%s1 + $0x2d0] sm:$0xff]
  %v111 = vld [vmem:[%s1 + $0x2d8] sm:$0xff]
  %v112 = vld [vmem:[%s1 + $0x2e0] sm:$0xff]
  %v113 = vld [vmem:[%s1 + $0x2e8] sm:$0xff]
  %v114 = vld [vmem:[%s1 + $0x2f0] sm:$0xff]
  %v115 = vld [vmem:[%s1 + $0x2f8] sm:$0xff]
  %v116 = vld [vmem:[%s2] sm:$0x1]
  %v118 = vperm.slane %v116, 0
  %120 = vmatpush.msra.mxu0 %v35
  %121 = vmatpush.msra.mxu0 %v34
  %122 = vmatpush.msra.mxu0 %v33
  %123 = vmatpush.msra.mxu0 %v32
  %124 = vmatpush.msra.mxu0 %v31
  %125 = vmatpush.msra.mxu0 %v30
  %126 = vmatpush.msra.mxu0 %v29
  %127 = vmatpush.msra.mxu0 %v28
  %128 = vmatpush.msra.mxu0 %v27
  %129 = vmatpush.msra.mxu0 %v26
  %130 = vmatpush.msra.mxu0 %v25
  %131 = vmatpush.msra.mxu0 %v24
  %132 = vmatpush.msra.mxu0 %v23
  %133 = vmatpush.msra.mxu0 %v22
  %134 = vmatpush.msra.mxu0 %v21
  %135 = vmatpush.msra.mxu0 %v20
  %136 = vmatmul.f32.gmra.mxu0 %v14
  %v137 = vpop.f32.mrf.mxu0
  %v138 = vadd.f32 %v118, %v137
  %139 = vdwg.mxu0
  %140 = vmatpush.msra.mxu0 %v51
  %141 = vmatpush.msra.mxu0 %v50
  %142 = vmatpush.msra.mxu0 %v49
  %143 = vmatpush.msra.mxu0 %v48
  %144 = vmatpush.msra.mxu0 %v47
  %145 = vmatpush.msra.mxu0 %v46
  %146 = vmatpush.msra.mxu0 %v45
  %147 = vmatpush.msra.mxu0 %v44
  %148 = vmatpush.msra.mxu0 %v43
  %149 = vmatpush.msra.mxu0 %v42
  %150 = vmatpush.msra.mxu0 %v41
  %151 = vmatpush.msra.mxu0 %v40
  %152 = vmatpush.msra.mxu0 %v39
  %153 = vmatpush.msra.mxu0 %v38
  %154 = vmatpush.msra.mxu0 %v37
  %155 = vmatpush.msra.mxu0 %v36
  %156 = vmatmul.f32.gmra.mxu0 %v15
  %v157 = vpop.f32.mrf.mxu0
  %v158 = vadd.f32 %v138, %v157
  %159 = vdwg.mxu0
  %160 = vmatpush.msra.mxu0 %v67
  %161 = vmatpush.msra.mxu0 %v66
  %162 = vmatpush.msra.mxu0 %v65
  %163 = vmatpush.msra.mxu0 %v64
  %164 = vmatpush.msra.mxu0 %v63
  %165 = vmatpush.msra.mxu0 %v62
  %166 = vmatpush.msra.mxu0 %v61
  %167 = vmatpush.msra.mxu0 %v60
  %168 = vmatpush.msra.mxu0 %v59
  %169 = vmatpush.msra.mxu0 %v58
  %170 = vmatpush.msra.mxu0 %v57
  %171 = vmatpush.msra.mxu0 %v56
  %172 = vmatpush.msra.mxu0 %v55
  %173 = vmatpush.msra.mxu0 %v54
  %174 = vmatpush.msra.mxu0 %v53
  %175 = vmatpush.msra.mxu0 %v52
  %176 = vmatmul.f32.gmra.mxu0 %v16
  %v177 = vpop.f32.mrf.mxu0
  %v178 = vadd.f32 %v158, %v177
  %179 = vdwg.mxu0
  %180 = vmatpush.msra.mxu0 %v83
  %181 = vmatpush.msra.mxu0 %v82
  %182 = vmatpush.msra.mxu0 %v81
  %183 = vmatpush.msra.mxu0 %v80
  %184 = vmatpush.msra.mxu0 %v79
  %185 = vmatpush.msra.mxu0 %v78
  %186 = vmatpush.msra.mxu0 %v77
  %187 = vmatpush.msra.mxu0 %v76
  %188 = vmatpush.msra.mxu0 %v75
  %189 = vmatpush.msra.mxu0 %v74
  %190 = vmatpush.msra.mxu0 %v73
  %191 = vmatpush.msra.mxu0 %v72
  %192 = vmatpush.msra.mxu0 %v71
  %193 = vmatpush.msra.mxu0 %v70
  %194 = vmatpush.msra.mxu0 %v69
  %195 = vmatpush.msra.mxu0 %v68
  %196 = vmatmul.f32.gmra.mxu0 %v17
  %v197 = vpop.f32.mrf.mxu0
  %v198 = vadd.f32 %v178, %v197
  %199 = vdwg.mxu0
  %200 = vmatpush.msra.mxu0 %v99
  %201 = vmatpush.msra.mxu0 %v98
  %202 = vmatpush.msra.mxu0 %v97
  %203 = vmatpush.msra.mxu0 %v96
  %204 = vmatpush.msra.mxu0 %v95
  %205 = vmatpush.msra.mxu0 %v94
  %206 = vmatpush.msra.mxu0 %v93
  %207 = vmatpush.msra.mxu0 %v92
  %208 = vmatpush.msra.mxu0 %v91
  %209 = vmatpush.msra.mxu0 %v90
  %210 = vmatpush.msra.mxu0 %v89
  %211 = vmatpush.msra.mxu0 %v88
  %212 = vmatpush.msra.mxu0 %v87
  %213 = vmatpush.msra.mxu0 %v86
  %214 = vmatpush.msra.mxu0 %v85
  %215 = vmatpush.msra.mxu0 %v84
  %216 = vmatmul.f32.gmra.mxu0 %v18
  %v217 = vpop.f32.mrf.mxu0
  %v218 = vadd.f32 %v198, %v217
  %219 = vdwg.mxu0
  %220 = vmatpush.msra.mxu0 %v115
  %221 = vmatpush.msra.mxu0 %v114
  %222 = vmatpush.msra.mxu0 %v113
  %223 = vmatpush.msra.mxu0 %v112
  %224 = vmatpush.msra.mxu0 %v111
  %225 = vmatpush.msra.mxu0 %v110
  %226 = vmatpush.msra.mxu0 %v109
  %227 = vmatpush.msra.mxu0 %v108
  %228 = vmatpush.msra.mxu0 %v107
  %229 = vmatpush.msra.mxu0 %v106
  %230 = vmatpush.msra.mxu0 %v105
  %231 = vmatpush.msra.mxu0 %v104
  %232 = vmatpush.msra.mxu0 %v103
  %233 = vmatpush.msra.mxu0 %v102
  %234 = vmatpush.msra.mxu0 %v101
  %235 = vmatpush.msra.mxu0 %v100
  %236 = vmatmul.f32.gmra.mxu0 %v19
  %v237 = vpop.f32.mrf.mxu0
  %v238 = vadd.f32 %v218, %v237
  %239 = vdwg.mxu0
  %v240 = vsub.f32 0.0, %v238
  %v241 = vmul.f32 %v240, 1.442695
  %v242 = vpow.pop %v241
  %v243 = vadd.f32 %v242, 1.0
  %v244 = vrcp.pop %v243
  %v245 = vmul.f32 %v243, %v244
  %v246 = vsub.f32 1.0, %v245
  %v247 = vmul.f32 %v244, %v246
  %v248 = vadd.f32 %v244, %v247
  %vm249 = vweird.f32 %v243
  %vm250 = vweird.f32 %v244
  %vm251 = vmor %vm249, %vm250
  %v252 = vsel %vm251, %v244, %v248
  %v253 = vand.u32 2147483647, %v243
  %vm254 = vcmp.eq.f32.partialorder %v253, 8.507059e+37
  %v255 = vand.u32 %v243, 2147483648
  %v256 = vor.u32 1.1754944e-38, %v255
  %v257 = vsel %vm254, %v256, %v252
  %v258 = vmul.f32 1.0, %v257
  %vm259 = vcmask 31744
  %260 = vst.msk [vmem:[%s3] sm:$0xff] %vm259, %v258
  // Predicated region
  $region14: #{tpu_custom_call.1} parent=0 // pred_check
    _
  $region15: #{tpu_custom_call.1} parent=0 // pred_check_branch
    %262 = sbr.rel (0) target = $region17
  $region16: #{tpu_custom_call.1} parent=0 // pred_region
    _
  $region17: #{tpu_custom_call.1} parent=0 // pred_fallthru
    _
  // Predicated region
  $region18: #{tpu_custom_call.1} parent=0 // pred_check
    _
  $region19: #{tpu_custom_call.1} parent=0 // pred_check_branch
    %264 = sbr.rel (0) target = $region21
  $region20: #{tpu_custom_call.1} parent=0 // pred_region
    _
  $region21: #{tpu_custom_call.1} parent=0 // pred_fallthru
    _

</llo_original>
